<compile_context>
chip_gen: v5e
topology: v5e:2x2
jax: 0.10.0
libtpu: 0.0.40
codegen_flags: <defaults>
</compile_context>

<pallas_src>
import math
import functools

import jax
import jax.numpy as jnp
from jax.experimental import pallas as pl
from jax.experimental.pallas import tpu as pltpu

LN_EPS = 1e-5
_SQRT2 = math.sqrt(2.0)


def _layernorm(x, w, b):
    mu = jnp.mean(x, axis=-1, keepdims=True)
    var = jnp.mean((x - mu) ** 2, axis=-1, keepdims=True)
    return (x - mu) * jax.lax.rsqrt(var + LN_EPS) * w + b


# --------------------------------------------------------------------------- #
# Trace-time hardware queries (all guarded with safe fallbacks)
# --------------------------------------------------------------------------- #
@functools.lru_cache(maxsize=None)
def _vmem_capacity_bytes():
    try:
        return int(getattr(pltpu.get_tpu_info(), "vmem_capacity_bytes", 64 << 20))
    except Exception:
        return 64 << 20        # conservative: fits every TPU generation


@functools.lru_cache(maxsize=None)
def _device_kind():
    try:
        return jax.devices()[0].device_kind.lower()
    except Exception:
        return ""


def _probe_buffered():
    """Probe (outside any trace) whether pipeline_mode=pl.Buffered(1) lowers."""
    def _copy(x_ref, o_ref):
        o_ref[...] = x_ref[...]
    try:
        spec = pl.BlockSpec((8, 128), lambda i: (0, 0),
                            pipeline_mode=pl.Buffered(1))
        fn = pl.pallas_call(
            _copy,
            out_shape=jax.ShapeDtypeStruct((8, 128), jnp.float32),
            grid=(1,),
            in_specs=[spec],
            out_specs=pl.BlockSpec((8, 128), lambda i: (0, 0)),
        )
        jax.block_until_ready(fn(jnp.zeros((8, 128), jnp.float32)))
        return True
    except Exception:
        return False


_BUFFERED_OK = _probe_buffered()   # evaluated at import, never inside a trace


def _spec(block_shape, index_map, *, buffers=None):
    """BlockSpec; constant-index blocks get single-buffering when supported."""
    if buffers is not None and _BUFFERED_OK:
        return pl.BlockSpec(block_shape, index_map,
                            pipeline_mode=pl.Buffered(buffers))
    return pl.BlockSpec(block_shape, index_map)


def _vmem_cap():
    # Leave DMA/scratch headroom below physical VMEM; never ask for >100 MiB.
    cap = min(_vmem_capacity_bytes() - (12 << 20), 100 << 20)
    return max(cap, 32 << 20)


def _vmem_limit(need_bytes):
    cap = _vmem_cap()
    return int(min(max(int(need_bytes * 1.25) + (2 << 20), 32 << 20), cap))


def _pick_tiles():
    """Generation-specific lm_head (token, vocab) tile defaults."""
    kind = _device_kind()
    if "v7" in kind:
        return 512, 1024           # 64 MiB VMEM/TC; ~310 flop/B needed
    if "v6" in kind:
        return 1024, 1024          # 128 MiB VMEM; ~650 flop/B needed
    if "v5" in kind:
        return 256, 512            # bf16 stream already hits ~240 flop/B roofline
    # Unknown generation: size from VMEM capacity.
    return (512, 1024) if _vmem_capacity_bytes() <= (80 << 20) else (1024, 1024)


# --------------------------------------------------------------------------- #
# Kernel 1: prologue  mid = LN2(GELU(LN1(h) @ Wd + bd))
#   grid: (T // tt_pro,) -- token tiles, fully parallel
# --------------------------------------------------------------------------- #
def _prologue_kernel(h_ref, ln1_w_ref, ln1_b_ref, dw_ref, db_ref,
                     ln2_w_ref, ln2_b_ref, mid_ref):
    x = _layernorm(h_ref[...].astype(jnp.float32), ln1_w_ref[...], ln1_b_ref[...])
    # Matmul in the weight dtype (bf16 on the fast path); f32 accumulation.
    y = jnp.dot(x.astype(dw_ref.dtype), dw_ref[...],
                preferred_element_type=jnp.float32) + db_ref[...]
    y = 0.5 * y * (1.0 + jax.lax.erf(y / _SQRT2))      # torch GELU (exact erf)
    mid_ref[...] = _layernorm(y, ln2_w_ref[...], ln2_b_ref[...]).astype(mid_ref.dtype)


# --------------------------------------------------------------------------- #
# Kernel 2: lm_head   out = mid @ lm_w + out_bias
# --------------------------------------------------------------------------- #
def _lm_head_kernel(mid_ref, lm_w_ref, bias_ref, out_ref):
    out_ref[...] = (
        jnp.dot(mid_ref[...], lm_w_ref[...], preferred_element_type=jnp.float32)
        + bias_ref[...]
    ).astype(out_ref.dtype)


# --------------------------------------------------------------------------- #
# Param prep (load-time, OUTSIDE the jitted forward): cast matmul weights once.
# --------------------------------------------------------------------------- #
def prepare_params(params, matmul_dtype=jnp.bfloat16):
    p = dict(params)
    p["dense_w"] = jnp.asarray(params["dense_w"], dtype=matmul_dtype)
    p["lm_w"] = jnp.asarray(params["lm_w"], dtype=matmul_dtype)
    return p


@functools.partial(jax.jit, static_argnames=("tt", "tv", "logits_dtype"))
def gpt_lm_head(hidden_states, params, *, tt=None, tv=None,
                logits_dtype=jnp.float32):
    T, H = hidden_states.shape
    E = params["dense_w"].shape[1]
    V = params["lm_w"].shape[1]

    w_dtype = params["lm_w"].dtype          # matmul dtype (bf16 fast / f32 exact)
    mid_dtype = w_dtype                     # prologue emits mid in matmul dtype
    wb = jnp.dtype(w_dtype).itemsize
    mb = jnp.dtype(mid_dtype).itemsize
    ob = jnp.dtype(logits_dtype).itemsize
    dwb = jnp.dtype(params["dense_w"].dtype).itemsize
    f32b = 4

    auto_tt, auto_tv = _pick_tiles()
    tt = auto_tt if tt is None else tt
    tv = auto_tv if tv is None else tv
    tt = min(tt, T)
    tv = min(tv, V)

    const_bufs = 1 if _BUFFERED_OK else 2
    budget = max(_vmem_cap() - (4 << 20), 24 << 20)

    # ---- lm_head tile footprint: shrink until it fits this generation's VMEM.
    def lm_bytes(t, v):
        return (const_bufs * t * E * mb      # mid tile (constant over inner loop)
                + 2 * E * v * wb             # lm_w tile (double-buffered stream)
                + 2 * v * f32b               # bias tile
                + 2 * t * v * ob)            # out tile

    while lm_bytes(tt, tv) > budget and tt > 64:
        tt //= 2
    while lm_bytes(tt, tv) > budget and tv > 128:
        tv //= 2

    # ---- prologue tile: sized independently (H is the wide axis there).
    def pro_bytes(t):
        return (2 * t * H * f32b
                + const_bufs * H * E * dwb
                + 2 * t * E * mb
                + const_bufs * (2 * H + 3 * E) * f32b)

    tt_pro = tt
    while pro_bytes(tt_pro) > budget and tt_pro > 8:
        tt_pro //= 2

    assert T % tt == 0 and T % tt_pro == 0, \
        "token count must be a multiple of the token tiles"
    assert V % tv == 0, "vocab size must be a multiple of the vocab tile"

    n_t, n_v = T // tt, V // tv

    # ---- prologue: mid = LN2(GELU(LN1(h) @ Wd + bd)) ---------------------- #
    mid = pl.pallas_call(
        _prologue_kernel,
        out_shape=jax.ShapeDtypeStruct((T, E), mid_dtype),
        grid_spec=pltpu.PrefetchScalarGridSpec(
            num_scalar_prefetch=0,
            grid=(T // tt_pro,),
            in_specs=[
                pl.BlockSpec((tt_pro, H), lambda i: (i, 0)),     # hidden tile
                _spec((1, H), lambda i: (0, 0), buffers=1),      # ln1 weight
                _spec((1, H), lambda i: (0, 0), buffers=1),      # ln1 bias
                _spec((H, E), lambda i: (0, 0), buffers=1),      # dense weight
                _spec((1, E), lambda i: (0, 0), buffers=1),      # dense bias
                _spec((1, E), lambda i: (0, 0), buffers=1),      # ln2 weight
                _spec((1, E), lambda i: (0, 0), buffers=1),      # ln2 bias
            ],
            out_specs=pl.BlockSpec((tt_pro, E), lambda i: (i, 0)),
        ),
        compiler_params=pltpu.CompilerParams(
            dimension_semantics=("parallel",),
            vmem_limit_bytes=_vmem_limit(pro_bytes(tt_pro)),
        ),
        cost_estimate=pl.CostEstimate(
            flops=int(2 * T * H * E + 12 * T * E + 6 * T * H),
            transcendentals=int(T * E),
            bytes_accessed=int(T * H * f32b + H * E * dwb + T * E * mb
                               + (2 * H + 3 * E) * f32b),
        ),
    )(
        hidden_states,
        params["ln1_w"], params["ln1_b"],
        params["dense_w"], params["dense_b"],
        params["ln2_w"], params["ln2_b"],
    )

    # ---- lm_head: out = mid @ lm_w + out_bias ----------------------------- #
    vocab_major = (n_t == 1)   # decode-like shapes: let megacore split vocab
    if vocab_major:
        grid = (n_v, n_t)
        mid_spec = _spec((tt, E), lambda j, i: (i, 0), buffers=1)   # resident
        lmw_spec = pl.BlockSpec((E, tv), lambda j, i: (0, j))
        bias_spec = _spec((1, tv), lambda j, i: (0, j), buffers=1)
        out_spec = pl.BlockSpec((tt, tv), lambda j, i: (i, j))
        # lm_w / bias streamed exactly once; mid fully resident.
        lm_total_bytes = T * E * mb + E * V * wb + V * f32b + T * V * ob
    else:
        grid = (n_t, n_v)
        mid_spec = _spec((tt, E), lambda i, j: (i, 0), buffers=1)   # const over j
        lmw_spec = pl.BlockSpec((E, tv), lambda i, j: (0, j))
        bias_spec = pl.BlockSpec((1, tv), lambda i, j: (0, j))
        out_spec = pl.BlockSpec((tt, tv), lambda i, j: (i, j))
        # lm_w and bias are re-streamed once per token tile under this grid.
        lm_total_bytes = (T * E * mb + n_t * E * V * wb + n_t * V * f32b
                          + T * V * ob)

    out = pl.pallas_call(
        _lm_head_kernel,
        out_shape=jax.ShapeDtypeStruct((T, V), logits_dtype),
        grid_spec=pltpu.PrefetchScalarGridSpec(
            num_scalar_prefetch=0,
            grid=grid,
            in_specs=[mid_spec, lmw_spec, bias_spec],
            out_specs=out_spec,
        ),
        compiler_params=pltpu.CompilerParams(
            dimension_semantics=("parallel", "parallel"),
            vmem_limit_bytes=_vmem_limit(lm_bytes(tt, tv)),
        ),
        cost_estimate=pl.CostEstimate(
            flops=int(2 * T * E * V),
            transcendentals=0,
            bytes_accessed=int(lm_total_bytes),
        ),
    )(mid, params["lm_w"], params["out_bias"])

    return out


# --------------------------------------------------------------------------- #
# Pure-JAX reference (exact f32 semantics of the PyTorch module)
# --------------------------------------------------------------------------- #
def reference_forward(hidden_states, params):
    x = _layernorm(hidden_states, params["ln1_w"], params["ln1_b"])
    y = x @ params["dense_w"] + params["dense_b"]
    y = 0.5 * y * (1.0 + jax.lax.erf(y / _SQRT2))
    y = _layernorm(y, params["ln2_w"], params["ln2_b"])
    return y @ params["lm_w"] + params["out_bias"]


if __name__ == "__main__":
    # Small, TPU-friendly shapes consistent with the module structure.
    B, S = 2, 8          # -> T = 16 tokens
    H = 256              # hidden_size
    E = 128              # embedding_size
    V = 1024             # padded_vocab_size
    T = B * S

    key = jax.random.PRNGKey(0)
    k_h, k_dw, k_db, k_lw, k_l1w, k_l1b, k_l2w, k_l2b = jax.random.split(key, 8)

    hidden_states = jax.random.normal(k_h, (T, H), dtype=jnp.float32)

    params = {
        "ln1_w": 1.0 + 0.02 * jax.random.normal(k_l1w, (1, H), jnp.float32),
        "ln1_b": 0.02 * jax.random.normal(k_l1b, (1, H), jnp.float32),
        "ln2_w": 1.0 + 0.02 * jax.random.normal(k_l2w, (1, E), jnp.float32),
        "ln2_b": 0.02 * jax.random.normal(k_l2b, (1, E), jnp.float32),
        "dense_w": 0.02 * jax.random.normal(k_dw, (H, E), jnp.float32),   # (H,E)
        "dense_b": 0.02 * jax.random.normal(k_db, (1, E), jnp.float32),
        "lm_w": 0.02 * jax.random.normal(k_lw, (E, V), jnp.float32),      # (E,V)
        "out_bias": jnp.zeros((1, V), jnp.float32),
    }

    ref = reference_forward(hidden_states, params)

    # Exact f32 path (tight tolerance). tt=8 -> 2 token tiles -> token-major grid.
    out_f32 = jax.block_until_ready(
        gpt_lm_head(hidden_states, params, tt=8, tv=512))
    assert out_f32.shape == (T, V)
    assert jnp.allclose(out_f32, ref, atol=1e-4, rtol=1e-4)

    # Default fast path: bf16 weights pre-cast once at "load time", bf16 mid,
    # generation-picked tiles (T//tt == 1 here -> vocab-major grid order so a
    # v7x megacore would split the vocab axis).  f32 accumulation throughout.
    params_bf16 = prepare_params(params, jnp.bfloat16)
    out_bf16 = jax.block_until_ready(gpt_lm_head(hidden_states, params_bf16))
    assert out_bf16.shape == (T, V)
    assert jnp.allclose(out_bf16, ref, atol=3e-2, rtol=2e-2)

    print("KERNEL_OK")
</pallas_src>

<mosaic_0001>
module attributes {stable_mosaic.version = 11 : i64} {
  func.func @_copy(%arg0: i32, %arg1: memref<8x128xf32, #tpu.memory_space<vmem>>, %arg2: memref<8x128xf32, #tpu.memory_space<vmem>>) attributes {dimension_semantics = [#tpu.dimension_semantics<arbitrary>], iteration_bounds = array<i64: 1>, scalar_prefetch = 0 : i64, scratch_operands = 0 : i64, tpu.core_type = #tpu.core_type<tc>, window_params = [{pipeline_mode = #tpu.pipeline_mode<synchronous>, transform_indices = @transform_0, window_bounds = array<i64: 8, 128>}, {pipeline_mode = #tpu.pipeline_mode<synchronous>, transform_indices = @transform_1, window_bounds = array<i64: 8, 128>}]} {
    %c0 = arith.constant 0 : index
    %c0_0 = arith.constant 0 : index
    %0 = vector.load %arg1[%c0, %c0_0] : memref<8x128xf32, #tpu.memory_space<vmem>>, vector<8x128xf32>
    %c0_1 = arith.constant 0 : index
    %c0_2 = arith.constant 0 : index
    %1 = vector.load %arg2[%c0_1, %c0_2] : memref<8x128xf32, #tpu.memory_space<vmem>>, vector<8x128xf32>
    tpu.vector_store %arg2[%c0_1, %c0_2], %0 {strides = array<i32>} : memref<8x128xf32, #tpu.memory_space<vmem>>, vector<8x128xf32>,
    return
  }
  func.func @transform_0(%arg0: i32) -> (i32, i32) {
    %c0_i32 = arith.constant 0 : i32
    %c0_i32_0 = arith.constant 0 : i32
    %c0_i32_1 = arith.constant 0 : i32
    return %c0_i32, %c0_i32_0 : i32, i32
  }
  func.func @transform_1(%arg0: i32) -> (i32, i32) {
    %c0_i32 = arith.constant 0 : i32
    %c0_i32_0 = arith.constant 0 : i32
    %c0_i32_1 = arith.constant 0 : i32
    return %c0_i32, %c0_i32_0 : i32, i32
  }
}

module attributes {stable_mosaic.version = 11 : i64} {
  func.func @_lm_head_kernel(%arg0: i32, %arg1: i32, %arg2: memref<8x128xf32, #tpu.memory_space<vmem>>, %arg3: memref<128x512xf32, #tpu.memory_space<vmem>>, %arg4: memref<1x512xf32, #tpu.memory_space<vmem>>, %arg5: memref<8x512xf32, #tpu.memory_space<vmem>>) attributes {dimension_semantics = [#tpu.dimension_semantics<parallel>, #tpu.dimension_semantics<parallel>], iteration_bounds = array<i64: 2, 2>, scalar_prefetch = 0 : i64, scratch_operands = 0 : i64, tpu.core_type = #tpu.core_type<tc>, window_params = [{transform_indices = @transform_0, window_bounds = array<i64: 8, 128>}, {transform_indices = @transform_1, window_bounds = array<i64: 128, 512>}, {transform_indices = @transform_2, window_bounds = array<i64: 1, 512>}, {transform_indices = @transform_3, window_bounds = array<i64: 8, 512>}]} {
    %c0 = arith.constant 0 : index
    %c0_0 = arith.constant 0 : index
    %0 = vector.load %arg2[%c0, %c0_0] : memref<8x128xf32, #tpu.memory_space<vmem>>, vector<8x128xf32>
    %c0_1 = arith.constant 0 : index
    %c0_2 = arith.constant 0 : index
    %1 = vector.load %arg3[%c0_1, %c0_2] : memref<128x512xf32, #tpu.memory_space<vmem>>, vector<128x512xf32>
    %cst = arith.constant dense<0.000000e+00> : vector<8x512xf32>
    %2 = tpu.matmul %0, %1, %cst {dimension_numbers = #tpu.dot_dimension_numbers<[1], [0], [0], [1], [0, 0, 1, 1], [], []>} : vector<8x128xf32>, vector<128x512xf32>, vector<8x512xf32> -> vector<8x512xf32>
    %c0_3 = arith.constant 0 : index
    %c0_4 = arith.constant 0 : index
    %3 = vector.load %arg4[%c0_3, %c0_4] : memref<1x512xf32, #tpu.memory_space<vmem>>, vector<1x512xf32>
    %4 = vector.broadcast %3 : vector<1x512xf32> to vector<8x512xf32>
    %5 = arith.addf %2, %4 : vector<8x512xf32>
    %c0_5 = arith.constant 0 : index
    %c0_6 = arith.constant 0 : index
    %6 = vector.load %arg5[%c0_5, %c0_6] : memref<8x512xf32, #tpu.memory_space<vmem>>, vector<8x512xf32>
    tpu.vector_store %arg5[%c0_5, %c0_6], %5 {strides = array<i32>} : memref<8x512xf32, #tpu.memory_space<vmem>>, vector<8x512xf32>,
    return
  }
  func.func @transform_0(%arg0: i32, %arg1: i32) -> (i32, i32) {
    %c0_i32 = arith.constant 0 : i32
    %c0_i32_0 = arith.constant 0 : i32
    return %arg0, %c0_i32 : i32, i32
  }
  func.func @transform_1(%arg0: i32, %arg1: i32) -> (i32, i32) {
    %c0_i32 = arith.constant 0 : i32
    %c0_i32_0 = arith.constant 0 : i32
    return %c0_i32, %arg1 : i32, i32
  }
  func.func @transform_2(%arg0: i32, %arg1: i32) -> (i32, i32) {
    %c0_i32 = arith.constant 0 : i32
    %c0_i32_0 = arith.constant 0 : i32
    return %c0_i32, %arg1 : i32, i32
  }
  func.func @transform_3(%arg0: i32, %arg1: i32) -> (i32, i32) {
    %c0_i32 = arith.constant 0 : i32
    return %arg0, %arg1 : i32, i32
  }
}

module attributes {stable_mosaic.version = 11 : i64} {
  func.func @_prologue_kernel(%arg0: i32, %arg1: memref<8x256xf32, #tpu.memory_space<vmem>>, %arg2: memref<1x256xf32, #tpu.memory_space<vmem>>, %arg3: memref<1x256xf32, #tpu.memory_space<vmem>>, %arg4: memref<256x128xf32, #tpu.memory_space<vmem>>, %arg5: memref<1x128xf32, #tpu.memory_space<vmem>>, %arg6: memref<1x128xf32, #tpu.memory_space<vmem>>, %arg7: memref<1x128xf32, #tpu.memory_space<vmem>>, %arg8: memref<8x128xf32, #tpu.memory_space<vmem>>) attributes {dimension_semantics = [#tpu.dimension_semantics<parallel>], iteration_bounds = array<i64: 2>, scalar_prefetch = 0 : i64, scratch_operands = 0 : i64, tpu.core_type = #tpu.core_type<tc>, window_params = [{transform_indices = @transform_0, window_bounds = array<i64: 8, 256>}, {pipeline_mode = #tpu.pipeline_mode<synchronous>, transform_indices = @transform_1, window_bounds = array<i64: 1, 256>}, {pipeline_mode = #tpu.pipeline_mode<synchronous>, transform_indices = @transform_2, window_bounds = array<i64: 1, 256>}, {pipeline_mode = #tpu.pipeline_mode<synchronous>, transform_indices = @transform_3, window_bounds = array<i64: 256, 128>}, {pipeline_mode = #tpu.pipeline_mode<synchronous>, transform_indices = @transform_4, window_bounds = array<i64: 1, 128>}, {pipeline_mode = #tpu.pipeline_mode<synchronous>, transform_indices = @transform_5, window_bounds = array<i64: 1, 128>}, {pipeline_mode = #tpu.pipeline_mode<synchronous>, transform_indices = @transform_6, window_bounds = array<i64: 1, 128>}, {transform_indices = @transform_7, window_bounds = array<i64: 8, 128>}]} {
    %c0 = arith.constant 0 : index
    %c0_0 = arith.constant 0 : index
    %0 = vector.load %arg1[%c0, %c0_0] : memref<8x256xf32, #tpu.memory_space<vmem>>, vector<8x256xf32>
    %c0_1 = arith.constant 0 : index
    %c0_2 = arith.constant 0 : index
    %1 = vector.load %arg2[%c0_1, %c0_2] : memref<1x256xf32, #tpu.memory_space<vmem>>, vector<1x256xf32>
    %c0_3 = arith.constant 0 : index
    %c0_4 = arith.constant 0 : index
    %2 = vector.load %arg3[%c0_3, %c0_4] : memref<1x256xf32, #tpu.memory_space<vmem>>, vector<1x256xf32>
    %cst = arith.constant dense<0.000000e+00> : vector<8xf32>
    %3 = vector.multi_reduction <add>, %0, %cst [1] : vector<8x256xf32> to vector<8xf32>
    %4 = vector.shape_cast %3 : vector<8xf32> to vector<8x1xf32>
    %cst_5 = arith.constant 2.560000e+02 : f32
    %5 = vector.broadcast %cst_5 : f32 to vector<8x1xf32>
    %6 = arith.divf %4, %5 : vector<8x1xf32>
    %7 = vector.broadcast %6 : vector<8x1xf32> to vector<8x256xf32>
    %8 = arith.subf %0, %7 : vector<8x256xf32>
    %9 = arith.mulf %8, %8 : vector<8x256xf32>
    %cst_6 = arith.constant dense<0.000000e+00> : vector<8xf32>
    %10 = vector.multi_reduction <add>, %9, %cst_6 [1] : vector<8x256xf32> to vector<8xf32>
    %11 = vector.shape_cast %10 : vector<8xf32> to vector<8x1xf32>
    %cst_7 = arith.constant 2.560000e+02 : f32
    %12 = vector.broadcast %cst_7 : f32 to vector<8x1xf32>
    %13 = arith.divf %11, %12 : vector<8x1xf32>
    %14 = vector.broadcast %6 : vector<8x1xf32> to vector<8x256xf32>
    %15 = arith.subf %0, %14 : vector<8x256xf32>
    %cst_8 = arith.constant 9.99999974E-6 : f32
    %16 = vector.broadcast %cst_8 : f32 to vector<8x1xf32>
    %17 = arith.addf %13, %16 : vector<8x1xf32>
    %18 = math.rsqrt %17 : vector<8x1xf32>
    %19 = vector.broadcast %18 : vector<8x1xf32> to vector<8x256xf32>
    %20 = arith.mulf %15, %19 : vector<8x256xf32>
    %21 = vector.broadcast %1 : vector<1x256xf32> to vector<8x256xf32>
    %22 = arith.mulf %20, %21 : vector<8x256xf32>
    %23 = vector.broadcast %2 : vector<1x256xf32> to vector<8x256xf32>
    %24 = arith.addf %22, %23 : vector<8x256xf32>
    %c0_9 = arith.constant 0 : index
    %c0_10 = arith.constant 0 : index
    %25 = vector.load %arg4[%c0_9, %c0_10] : memref<256x128xf32, #tpu.memory_space<vmem>>, vector<256x128xf32>
    %cst_11 = arith.constant dense<0.000000e+00> : vector<8x128xf32>
    %26 = tpu.matmul %24, %25, %cst_11 {dimension_numbers = #tpu.dot_dimension_numbers<[1], [0], [0], [1], [0, 0, 1, 1], [], []>} : vector<8x256xf32>, vector<256x128xf32>, vector<8x128xf32> -> vector<8x128xf32>
    %c0_12 = arith.constant 0 : index
    %c0_13 = arith.constant 0 : index
    %27 = vector.load %arg5[%c0_12, %c0_13] : memref<1x128xf32, #tpu.memory_space<vmem>>, vector<1x128xf32>
    %28 = vector.broadcast %27 : vector<1x128xf32> to vector<8x128xf32>
    %29 = arith.addf %26, %28 : vector<8x128xf32>
    %cst_14 = arith.constant 5.000000e-01 : f32
    %30 = vector.broadcast %cst_14 : f32 to vector<8x128xf32>
    %31 = arith.mulf %30, %29 : vector<8x128xf32>
    %cst_15 = arith.constant 1.41421354 : f32
    %32 = vector.broadcast %cst_15 : f32 to vector<8x128xf32>
    %33 = arith.divf %29, %32 : vector<8x128xf32>
    %34 = math.erf %33 : vector<8x128xf32>
    %cst_16 = arith.constant 1.000000e+00 : f32
    %35 = vector.broadcast %cst_16 : f32 to vector<8x128xf32>
    %36 = arith.addf %35, %34 : vector<8x128xf32>
    %37 = arith.mulf %31, %36 : vector<8x128xf32>
    %c0_17 = arith.constant 0 : index
    %c0_18 = arith.constant 0 : index
    %38 = vector.load %arg6[%c0_17, %c0_18] : memref<1x128xf32, #tpu.memory_space<vmem>>, vector<1x128xf32>
    %c0_19 = arith.constant 0 : index
    %c0_20 = arith.constant 0 : index
    %39 = vector.load %arg7[%c0_19, %c0_20] : memref<1x128xf32, #tpu.memory_space<vmem>>, vector<1x128xf32>
    %cst_21 = arith.constant dense<0.000000e+00> : vector<8xf32>
    %40 = vector.multi_reduction <add>, %37, %cst_21 [1] : vector<8x128xf32> to vector<8xf32>
    %41 = vector.shape_cast %40 : vector<8xf32> to vector<8x1xf32>
    %cst_22 = arith.constant 1.280000e+02 : f32
    %42 = vector.broadcast %cst_22 : f32 to vector<8x1xf32>
    %43 = arith.divf %41, %42 : vector<8x1xf32>
    %44 = vector.broadcast %43 : vector<8x1xf32> to vector<8x128xf32>
    %45 = arith.subf %37, %44 : vector<8x128xf32>
    %46 = arith.mulf %45, %45 : vector<8x128xf32>
    %cst_23 = arith.constant dense<0.000000e+00> : vector<8xf32>
    %47 = vector.multi_reduction <add>, %46, %cst_23 [1] : vector<8x128xf32> to vector<8xf32>
    %48 = vector.shape_cast %47 : vector<8xf32> to vector<8x1xf32>
    %cst_24 = arith.constant 1.280000e+02 : f32
    %49 = vector.broadcast %cst_24 : f32 to vector<8x1xf32>
    %50 = arith.divf %48, %49 : vector<8x1xf32>
    %51 = vector.broadcast %43 : vector<8x1xf32> to vector<8x128xf32>
    %52 = arith.subf %37, %51 : vector<8x128xf32>
    %cst_25 = arith.constant 9.99999974E-6 : f32
    %53 = vector.broadcast %cst_25 : f32 to vector<8x1xf32>
    %54 = arith.addf %50, %53 : vector<8x1xf32>
    %55 = math.rsqrt %54 : vector<8x1xf32>
    %56 = vector.broadcast %55 : vector<8x1xf32> to vector<8x128xf32>
    %57 = arith.mulf %52, %56 : vector<8x128xf32>
    %58 = vector.broadcast %38 : vector<1x128xf32> to vector<8x128xf32>
    %59 = arith.mulf %57, %58 : vector<8x128xf32>
    %60 = vector.broadcast %39 : vector<1x128xf32> to vector<8x128xf32>
    %61 = arith.addf %59, %60 : vector<8x128xf32>
    %c0_26 = arith.constant 0 : index
    %c0_27 = arith.constant 0 : index
    %62 = vector.load %arg8[%c0_26, %c0_27] : memref<8x128xf32, #tpu.memory_space<vmem>>, vector<8x128xf32>
    tpu.vector_store %arg8[%c0_26, %c0_27], %61 {strides = array<i32>} : memref<8x128xf32, #tpu.memory_space<vmem>>, vector<8x128xf32>,
    return
  }
  func.func @transform_0(%arg0: i32) -> (i32, i32) {
    %c0_i32 = arith.constant 0 : i32
    %c0_i32_0 = arith.constant 0 : i32
    return %arg0, %c0_i32 : i32, i32
  }
  func.func @transform_1(%arg0: i32) -> (i32, i32) {
    %c0_i32 = arith.constant 0 : i32
    %c0_i32_0 = arith.constant 0 : i32
    %c0_i32_1 = arith.constant 0 : i32
    return %c0_i32, %c0_i32_0 : i32, i32
  }
  func.func @transform_2(%arg0: i32) -> (i32, i32) {
    %c0_i32 = arith.constant 0 : i32
    %c0_i32_0 = arith.constant 0 : i32
    %c0_i32_1 = arith.constant 0 : i32
    return %c0_i32, %c0_i32_0 : i32, i32
  }
  func.func @transform_3(%arg0: i32) -> (i32, i32) {
    %c0_i32 = arith.constant 0 : i32
    %c0_i32_0 = arith.constant 0 : i32
    %c0_i32_1 = arith.constant 0 : i32
    return %c0_i32, %c0_i32_0 : i32, i32
  }
  func.func @transform_4(%arg0: i32) -> (i32, i32) {
    %c0_i32 = arith.constant 0 : i32
    %c0_i32_0 = arith.constant 0 : i32
    %c0_i32_1 = arith.constant 0 : i32
    return %c0_i32, %c0_i32_0 : i32, i32
  }
  func.func @transform_5(%arg0: i32) -> (i32, i32) {
    %c0_i32 = arith.constant 0 : i32
    %c0_i32_0 = arith.constant 0 : i32
    %c0_i32_1 = arith.constant 0 : i32
    return %c0_i32, %c0_i32_0 : i32, i32
  }
  func.func @transform_6(%arg0: i32) -> (i32, i32) {
    %c0_i32 = arith.constant 0 : i32
    %c0_i32_0 = arith.constant 0 : i32
    %c0_i32_1 = arith.constant 0 : i32
    return %c0_i32, %c0_i32_0 : i32, i32
  }
  func.func @transform_7(%arg0: i32) -> (i32, i32) {
    %c0_i32 = arith.constant 0 : i32
    %c0_i32_0 = arith.constant 0 : i32
    return %arg0, %c0_i32 : i32, i32
  }
}

</mosaic_0001>

<llo_original>
// kernel: tpu_custom_call.1
$region0: #{tpu_custom_call.1}
  #allocation0 [shape = 'u32[]', space=smem, size = 0x4, offset = 0x4, fixed_abs, tag = 'smem constant byte address 0x4 - core index']
  #allocation1 [shape = 'u32[72,128]{1,0:T(1,128)}', space=vmem, size = 0x9000, scoped, tag = 'internal scratch']
  %s0 = inlined_call_operand.hbm [shape: f32[8,128], index: 0, kind: input, shape index: {}]
  %s1 = inlined_call_operand.hbm [shape: f32[8,128], index: 1, kind: output, shape index: {}]
  %s2 = sld [smem:[#allocation0]]
  $region18: #{tpu_custom_call.1} parent=0
    _
  %s4 = ssub.s32 1, %s2
  %s5 = scalar_select 0, %s4, %s2
  $region1: #{tpu_custom_call.1} parent=0
    #allocation2 [shape = 'u8[4096]{0}', space=vmem, size = 0x1000, scoped, tag = 'input window, operand 0, single buffered']
    #allocation3 [shape = 's32[1]{0}', space=sflag, size = 0x4, scoped, tag = 'scoped memory for tpu_custom_call.1']
    #allocation4 [shape = 's32[1]{0}', space=sflag, size = 0x4, scoped, tag = 'scoped memory for tpu_custom_call.1']
    #allocation5 [shape = 'u8[4096]{0}', space=vmem, size = 0x1000, scoped, tag = 'output window, operand 0, single buffered']
    %6 = vsyncpa [#allocation3], 0
    %7 = vsyncpa [#allocation4], 0
    // Predicated region
    $region2: #{tpu_custom_call.1} parent=1 // pred_check
      _
    $region3: #{tpu_custom_call.1} parent=1 // pred_check_branch
      %9 = sbr.rel (0) target = $region5
    $region4: #{tpu_custom_call.1} parent=1 // pred_region
      %11 = vsyncadd [#allocation3], 0
      %s13 = sshll.u32 %s0, 4
      %s14 = int_to_ptr.hbm [resolvable:$true] %s13
      %s15 = sshll.u32 [#allocation2], 4
      %s16 = int_to_ptr.vmem [resolvable:$true] %s15
      %18 = dma.hbm_to_vmem [thread:$0]  %s14, 128, %s16, [#allocation3]
    $region5: #{tpu_custom_call.1} parent=1 // pred_fallthru
      _
    // Predicated region
    $region6: #{tpu_custom_call.1} parent=1 // pred_check
      _
    $region7: #{tpu_custom_call.1} parent=1 // pred_check_branch
      %20 = sbr.rel (0) target = $region9
    $region8: #{tpu_custom_call.1} parent=1 // pred_region
      %22 = dma.done [#allocation3], 128
    $region9: #{tpu_custom_call.1} parent=1 // pred_fallthru
      _
    %v23 = vld [vmem:[#allocation2] sm:$0xff]
    %24 = vst [vmem:[#allocation5] sm:$0xff] %v23
    // Predicated region
    $region10: #{tpu_custom_call.1} parent=1 // pred_check
      _
    $region11: #{tpu_custom_call.1} parent=1 // pred_check_branch
      %26 = sbr.rel (0) target = $region13
    $region12: #{tpu_custom_call.1} parent=1 // pred_region
      %28 = vsyncadd [#allocation4], 0
      %s30 = sshll.u32 [#allocation5], 4
      %s31 = int_to_ptr.vmem [resolvable:$true] %s30
      %s32 = sshll.u32 %s1, 4
      %s33 = int_to_ptr.hbm [resolvable:$true] %s32
      %35 = dma.vmem_to_hbm [thread:$0]  %s31, 128, %s33, [#allocation4]
    $region13: #{tpu_custom_call.1} parent=1 // pred_fallthru
      _
    // Predicated region
    $region14: #{tpu_custom_call.1} parent=1 // pred_check
      _
    $region15: #{tpu_custom_call.1} parent=1 // pred_check_branch
      %37 = sbr.rel (0) target = $region17
    $region16: #{tpu_custom_call.1} parent=1 // pred_region
      %39 = dma.done [#allocation4], 128
    $region17: #{tpu_custom_call.1} parent=1 // pred_fallthru
      _
    %40 = vsyncpa [#allocation3], 1
    %41 = vsyncpa [#allocation4], 1

// kernel: gpt_lm_head.3
$region0: #{gpt_lm_head.3}
  #allocation0 [shape = 'u32[]', space=smem, size = 0x4, offset = 0x4, fixed_abs, tag = 'smem constant byte address 0x4 - core index']
  #allocation1 [shape = 'u32[72,128]{1,0:T(1,128)}', space=vmem, size = 0x9000, scoped, tag = 'internal scratch']
  %s0 = inlined_call_operand.vmem [shape: f32[16,128], index: 0, kind: input, shape index: {}]
  %s1 = inlined_call_operand.hbm [shape: f32[128,1024], index: 1, kind: input, shape index: {}]
  %s2 = inlined_call_operand.vmem [shape: f32[1,1024], index: 2, kind: input, shape index: {}]
  %s3 = inlined_call_operand.hbm [shape: f32[16,1024], index: 3, kind: output, shape index: {}]
  %s4 = sld [smem:[#allocation0]]
  $region49: #{gpt_lm_head.3} parent=0
    _
  %s6 = ssub.s32 1, %s4
  %s7 = scalar_select 0, %s6, %s4
  $region1: #{gpt_lm_head.3} parent=0
    #allocation2 [shape = 'u8[524288]{0}', space=vmem, size = 0x80000, scoped, tag = 'input window, operand 1']
    #allocation3 [shape = 's32[2]{0}', space=sflag, size = 0x8, scoped, tag = 'scoped memory for gpt_lm_head.3']
    #allocation4 [shape = 's32[2]{0}', space=sflag, size = 0x8, scoped, tag = 'scoped memory for gpt_lm_head.3']
    #allocation5 [shape = 'u8[32768]{0}', space=vmem, size = 0x8000, scoped, tag = 'output window, operand 0']
    %8 = vsyncpa [#allocation3], 0
    %s9 = scalar_lea.sflag [#allocation3], 1
    %10 = vsyncpa %s9, 0
    %11 = vsyncpa [#allocation4], 0
    %s12 = scalar_lea.sflag [#allocation4], 1
    %13 = vsyncpa %s12, 0
    loop: start=0, step=1, limit=6
    $region2: #{gpt_lm_head.3} parent=1 // loop_pre_header
      _
    $region3: #{gpt_lm_head.3} parent=1 // loop_header
      %s15 = sphi 0, %s19
      %p16 = scmp.ge.s32.totalorder %s15, 6
      %s22 = sphi 0, %s34
      %s23 = sphi 0, %s30
      %s24 = sphi 0, %s22
      %s25 = sphi 0, %s23
      %s26 = sphi 0, %s24
      %s27 = sphi 0, %s25
      %s37 = sphi 0, %s39
      %s40 = sphi 0, %s37
      %s41 = sphi 0, %s40
      %s57 = sphi 0, %s41
      %s63 = sphi 0, %s65
      %s66 = sphi 0, %s63
      %s67 = sphi 0, %s66
      %s83 = sphi 0, %s67
      %s89 = sphi 0, %s91
      %s92 = sphi 0, %s89
      %s93 = sphi 0, %s92
      %s109 = sphi 0, %s93
      %s117 = sphi 0, %s119
      %s120 = sphi 0, %s117
      %s121 = sphi 0, %s120
      %s137 = sphi 0, %s121
    $region4: #{gpt_lm_head.3} parent=1 // loop_header_branch
      %18 = sbr.rel (%p16) target = $region8
    $region5: #{gpt_lm_head.3} parent=1 // loop_body
      %s20 = ssub.s32 %s15, 1
      %s21 = ssub.s32 %s15, 2
      %s28 = sadd.s32 1, %s23
      %p29 = scmp.ge.s32.totalorder %s28, 2
      %s30 = scalar_select %p29, 0, %s28
      %s31 = sadd.s32 1, %s22
      %s32 = scalar_select %p29, %s31, %s22
      %p33 = scmp.ge.s32.totalorder %s32, 2
      %s34 = scalar_select %p33, 0, %s32
      %s35 = ssub.s32 %s22, %s34
      %p36 = scmp.eq.s32.totalorder %s35, 0
      %s38 = sadd.s32 %s37, 1
      %s39 = scalar_select %p36, %s37, %s38
      %p42 = pneg %p36
      %p43 = scmp.eq.s32.totalorder %s15, 3
      %p44 = por %p42, %p43
      %p45 = scmp.ne.s32.totalorder %s37, %s40
      %p46 = scmp.eq.s32.totalorder %s15, 0
      %p47 = por %p45, %p46
      %p48 = scmp.ne.s32.totalorder %s37, %s40
      %p49 = scmp.eq.s32.totalorder %s20, 3
      %p50 = por %p48, %p49
      %p51 = scmp.ne.s32.totalorder %s40, %s41
      %p52 = scmp.eq.s32.totalorder %s20, 0
      %p53 = por %p51, %p52
      %p54 = scmp.ne.s32.totalorder %s40, %s41
      %p55 = scmp.eq.s32.totalorder %s21, 3
      %p56 = por %p54, %p55
      %p58 = scmp.ne.s32.totalorder %s41, %s57
      %p59 = scmp.eq.s32.totalorder %s21, 0
      %p60 = por %p58, %p59
      %s61 = ssub.s32 %s23, %s30
      %p62 = scmp.eq.s32.totalorder %s61, 0
      %s64 = sadd.s32 %s63, 1
      %s65 = scalar_select %p62, %s63, %s64
      %p68 = pneg %p62
      %p69 = scmp.eq.s32.totalorder %s15, 3
      %p70 = por %p68, %p69
      %p71 = scmp.ne.s32.totalorder %s63, %s66
      %p72 = scmp.eq.s32.totalorder %s15, 0
      %p73 = por %p71, %p72
      %p74 = scmp.ne.s32.totalorder %s63, %s66
      %p75 = scmp.eq.s32.totalorder %s20, 3
      %p76 = por %p74, %p75
      %p77 = scmp.ne.s32.totalorder %s66, %s67
      %p78 = scmp.eq.s32.totalorder %s20, 0
      %p79 = por %p77, %p78
      %p80 = scmp.ne.s32.totalorder %s66, %s67
      %p81 = scmp.eq.s32.totalorder %s21, 3
      %p82 = por %p80, %p81
      %p84 = scmp.ne.s32.totalorder %s67, %s83
      %p85 = scmp.eq.s32.totalorder %s21, 0
      %p86 = por %p84, %p85
      %s87 = ssub.s32 %s23, %s30
      %p88 = scmp.eq.s32.totalorder %s87, 0
      %s90 = sadd.s32 %s89, 1
      %s91 = scalar_select %p88, %s89, %s90
      %p94 = pneg %p88
      %p95 = scmp.eq.s32.totalorder %s15, 3
      %p96 = por %p94, %p95
      %p97 = scmp.ne.s32.totalorder %s89, %s92
      %p98 = scmp.eq.s32.totalorder %s15, 0
      %p99 = por %p97, %p98
      %p100 = scmp.ne.s32.totalorder %s89, %s92
      %p101 = scmp.eq.s32.totalorder %s20, 3
      %p102 = por %p100, %p101
      %p103 = scmp.ne.s32.totalorder %s92, %s93
      %p104 = scmp.eq.s32.totalorder %s20, 0
      %p105 = por %p103, %p104
      %p106 = scmp.ne.s32.totalorder %s92, %s93
      %p107 = scmp.eq.s32.totalorder %s21, 3
      %p108 = por %p106, %p107
      %p110 = scmp.ne.s32.totalorder %s93, %s109
      %p111 = scmp.eq.s32.totalorder %s21, 0
      %p112 = por %p110, %p111
      %s113 = ssub.s32 %s22, %s34
      %s114 = ssub.s32 %s23, %s30
      %s115 = sor.u32 %s113, %s114
      %p116 = scmp.eq.s32.totalorder %s115, 0
      %s118 = sadd.s32 %s117, 1
      %s119 = scalar_select %p116, %s117, %s118
      %p122 = pneg %p116
      %p123 = scmp.eq.s32.totalorder %s15, 3
      %p124 = por %p122, %p123
      %p125 = scmp.ne.s32.totalorder %s117, %s120
      %p126 = scmp.eq.s32.totalorder %s15, 0
      %p127 = por %p125, %p126
      %p128 = scmp.ne.s32.totalorder %s117, %s120
      %p129 = scmp.eq.s32.totalorder %s20, 3
      %p130 = por %p128, %p129
      %p131 = scmp.ne.s32.totalorder %s120, %s121
      %p132 = scmp.eq.s32.totalorder %s20, 0
      %p133 = por %p131, %p132
      %p134 = scmp.ne.s32.totalorder %s120, %s121
      %p135 = scmp.eq.s32.totalorder %s21, 3
      %p136 = por %p134, %p135
      %p138 = scmp.ne.s32.totalorder %s121, %s137
      %p139 = scmp.eq.s32.totalorder %s21, 0
      %p140 = por %p138, %p139
      %p141 = scmp.le.s32.totalorder 1, %s15
      %p142 = scmp.lt.s32.totalorder %s15, 5
      %p143 = pnand %p141, %p142
      %p144 = pneg %p143
      // Predicated region
      $region9: #{gpt_lm_head.3} parent=5 // pred_check
        _
      $region10: #{gpt_lm_head.3} parent=5 // pred_check_branch
        %146 = sbr.rel (%p143) target = $region12
      $region11: #{gpt_lm_head.3} parent=5 // pred_region
        %s147 = ssub.s32 %s15, 1
      $region12: #{gpt_lm_head.3} parent=5 // pred_fallthru
        _
      %p148 = scmp.lt.s32.totalorder %s15, 4
      // Predicated region
      $region13: #{gpt_lm_head.3} parent=5 // pred_check
        %p149 = pneg %p148
      $region14: #{gpt_lm_head.3} parent=5 // pred_check_branch
        %151 = sbr.rel (%p149) target = $region16
      $region15: #{gpt_lm_head.3} parent=5 // pred_region
        // Predicated region
        $region17: #{gpt_lm_head.3} parent=15 // pred_check
          %p152 = pneg %p47
        $region18: #{gpt_lm_head.3} parent=15 // pred_check_branch
          %154 = sbr.rel (%p152) target = $region20
        $region19: #{gpt_lm_head.3} parent=15 // pred_region
          %p155 = scmp.lt.s32.totalorder %s22, 1
          %s156 = scalar_select %p155, %s22, 1
          %s157 = smul.addr %s156, 8
          %s158 = scalar_lea.vmem %s0, %s157
        $region20: #{gpt_lm_head.3} parent=15 // pred_fallthru
          _
        // Predicated region
        $region21: #{gpt_lm_head.3} parent=15 // pred_check
          %p159 = pneg %p73
        $region22: #{gpt_lm_head.3} parent=15 // pred_check_branch
          %161 = sbr.rel (%p159) target = $region24
        $region23: #{gpt_lm_head.3} parent=15 // pred_region
          %s162 = sand.u32 %s63, 1
          %s163 = scalar_lea.sflag [#allocation3], %s162
          %s164 = sand.u32 %s63, 1
          %s165 = smul.addr %s164, 512
          %s166 = scalar_lea.vmem [#allocation2], %s165
          %s167 = smul.u32 4, %s23
          %169 = vsyncadd %s163, 0
          %s170 = smul.addr %s167, 8
          %s171 = scalar_lea.hbm %s1, %s170
          %s172 = sshll.u32 %s171, 4
          %s173 = int_to_ptr.hbm [resolvable:$true] %s172
          %s174 = sshll.u32 %s166, 4
          %s175 = int_to_ptr.vmem [resolvable:$true] %s174
          %180 = dma.hbm_to_vmem [thread:$0]  %s173, 8192, %s175, %s163, 1024, 512, 32
        $region24: #{gpt_lm_head.3} parent=15 // pred_fallthru
          _
        // Predicated region
        $region25: #{gpt_lm_head.3} parent=15 // pred_check
          %p181 = pneg %p99
        $region26: #{gpt_lm_head.3} parent=15 // pred_check_branch
          %183 = sbr.rel (%p181) target = $region28
        $region27: #{gpt_lm_head.3} parent=15 // pred_region
          %s184 = smul.u32 4, %s23
          %p185 = scmp.lt.s32.totalorder %s184, 7
          %s186 = scalar_select %p185, %s184, 7
          %s187 = scalar_lea.vmem %s2, %s186
          %s188 = smul.u32 4, %s23
        $region28: #{gpt_lm_head.3} parent=15 // pred_fallthru
          _
      $region16: #{gpt_lm_head.3} parent=5 // pred_fallthru
        _
      %p189 = scmp.le.s32.totalorder 1, %s15
      %p190 = scmp.lt.s32.totalorder %s15, 5
      %p191 = pnand %p189, %p190
      %p192 = pneg %p191
      // Predicated region
      $region29: #{gpt_lm_head.3} parent=5 // pred_check
        _
      $region30: #{gpt_lm_head.3} parent=5 // pred_check_branch
        %194 = sbr.rel (%p191) target = $region32
      $region31: #{gpt_lm_head.3} parent=5 // pred_region
        %s195 = ssub.s32 %s15, 1
        %s196 = sand.u32 %s66, 1
        %s197 = scalar_lea.sflag [#allocation3], %s196
        %s198 = sand.u32 %s66, 1
        %s199 = smul.addr %s198, 512
        %s200 = scalar_lea.vmem [#allocation2], %s199
        // Predicated region
        $region33: #{gpt_lm_head.3} parent=31 // pred_check
          %p201 = pneg %p79
        $region34: #{gpt_lm_head.3} parent=31 // pred_check_branch
          %203 = sbr.rel (%p201) target = $region36
        $region35: #{gpt_lm_head.3} parent=31 // pred_region
          %205 = dma.done %s197, 8192
        $region36: #{gpt_lm_head.3} parent=31 // pred_fallthru
          _
        %p206 = scmp.lt.s32.totalorder %s24, 1
        %s207 = scalar_select %p206, %s24, 1
        %s208 = smul.addr %s207, 8
        %s209 = scalar_lea.vmem %s0, %s208
        %p210 = pneg %p53
        %p211 = pneg %p50
        %s212 = sand.u32 %s66, 1
        %s213 = scalar_lea.sflag [#allocation3], %s212
        %s214 = sand.u32 %s66, 1
        %s215 = smul.addr %s214, 512
        %s216 = scalar_lea.vmem [#allocation2], %s215
        %p217 = pneg %p79
        %p218 = pneg %p76
        %s219 = smul.u32 4, %s25
        %p220 = scmp.lt.s32.totalorder %s219, 7
        %s221 = scalar_select %p220, %s219, 7
        %s222 = scalar_lea.vmem %s2, %s221
        %p223 = pneg %p105
        %p224 = pneg %p102
        %p225 = pneg %p133
        %p226 = pneg %p130
        %s227 = sand.u32 %s120, 1
        %s228 = scalar_lea.sflag [#allocation4], %s227
        %s229 = sand.u32 %s120, 1
        %s230 = smul.addr %s229, 32
        %s231 = scalar_lea.vmem [#allocation5], %s230
        %p232 = scmp.lt.s32.totalorder %s24, 1
        %s233 = scalar_select %p232, %s24, 1
        %s234 = smul.addr %s233, 8
        %s235 = scalar_lea.vmem %s0, %s234
        %s236 = smul.u32 4, %s25
        %s237 = smul.u32 4, %s25
        %p238 = scmp.lt.s32.totalorder %s237, 7
        %s239 = scalar_select %p238, %s237, 7
        %s240 = scalar_lea.vmem %s2, %s239
        %s241 = smul.u32 4, %s25
        %s242 = smul.u32 4, %s25
        %v243 = vld [vmem:[%s235] sm:$0xff]
        %v244 = vld [vmem:[%s200] sm:$0xff]
        %v245 = vld [vmem:[%s200 + $0x8] sm:$0xff]
        %v246 = vld [vmem:[%s200 + $0x10] sm:$0xff]
        %v247 = vld [vmem:[%s200 + $0x18] sm:$0xff]
        %v248 = vld [vmem:[%s200 + $0x20] sm:$0xff]
        %v249 = vld [vmem:[%s200 + $0x28] sm:$0xff]
        %v250 = vld [vmem:[%s200 + $0x30] sm:$0xff]
        %v251 = vld [vmem:[%s200 + $0x38] sm:$0xff]
        %v252 = vld [vmem:[%s200 + $0x40] sm:$0xff]
        %v253 = vld [vmem:[%s200 + $0x48] sm:$0xff]
        %v254 = vld [vmem:[%s200 + $0x50] sm:$0xff]
        %v255 = vld [vmem:[%s200 + $0x58] sm:$0xff]
        %v256 = vld [vmem:[%s200 + $0x60] sm:$0xff]
        %v257 = vld [vmem:[%s200 + $0x68] sm:$0xff]
        %v258 = vld [vmem:[%s200 + $0x70] sm:$0xff]
        %v259 = vld [vmem:[%s200 + $0x78] sm:$0xff]
        %v260 = vld [vmem:[%s200 + $0x80] sm:$0xff]
        %v261 = vld [vmem:[%s200 + $0x88] sm:$0xff]
        %v262 = vld [vmem:[%s200 + $0x90] sm:$0xff]
        %v263 = vld [vmem:[%s200 + $0x98] sm:$0xff]
        %v264 = vld [vmem:[%s200 + $0xa0] sm:$0xff]
        %v265 = vld [vmem:[%s200 + $0xa8] sm:$0xff]
        %v266 = vld [vmem:[%s200 + $0xb0] sm:$0xff]
        %v267 = vld [vmem:[%s200 + $0xb8] sm:$0xff]
        %v268 = vld [vmem:[%s200 + $0xc0] sm:$0xff]
        %v269 = vld [vmem:[%s200 + $0xc8] sm:$0xff]
        %v270 = vld [vmem:[%s200 + $0xd0] sm:$0xff]
        %v271 = vld [vmem:[%s200 + $0xd8] sm:$0xff]
        %v272 = vld [vmem:[%s200 + $0xe0] sm:$0xff]
        %v273 = vld [vmem:[%s200 + $0xe8] sm:$0xff]
        %v274 = vld [vmem:[%s200 + $0xf0] sm:$0xff]
        %v275 = vld [vmem:[%s200 + $0xf8] sm:$0xff]
        %v276 = vld [vmem:[%s200 + $0x100] sm:$0xff]
        %v277 = vld [vmem:[%s200 + $0x108] sm:$0xff]
        %v278 = vld [vmem:[%s200 + $0x110] sm:$0xff]
        %v279 = vld [vmem:[%s200 + $0x118] sm:$0xff]
        %v280 = vld [vmem:[%s200 + $0x120] sm:$0xff]
        %v281 = vld [vmem:[%s200 + $0x128] sm:$0xff]
        %v282 = vld [vmem:[%s200 + $0x130] sm:$0xff]
        %v283 = vld [vmem:[%s200 + $0x138] sm:$0xff]
        %v284 = vld [vmem:[%s200 + $0x140] sm:$0xff]
        %v285 = vld [vmem:[%s200 + $0x148] sm:$0xff]
        %v286 = vld [vmem:[%s200 + $0x150] sm:$0xff]
        %v287 = vld [vmem:[%s200 + $0x158] sm:$0xff]
        %v288 = vld [vmem:[%s200 + $0x160] sm:$0xff]
        %v289 = vld [vmem:[%s200 + $0x168] sm:$0xff]
        %v290 = vld [vmem:[%s200 + $0x170] sm:$0xff]
        %v291 = vld [vmem:[%s200 + $0x178] sm:$0xff]
        %v292 = vld [vmem:[%s200 + $0x180] sm:$0xff]
        %v293 = vld [vmem:[%s200 + $0x188] sm:$0xff]
        %v294 = vld [vmem:[%s200 + $0x190] sm:$0xff]
        %v295 = vld [vmem:[%s200 + $0x198] sm:$0xff]
        %v296 = vld [vmem:[%s200 + $0x1a0] sm:$0xff]
        %v297 = vld [vmem:[%s200 + $0x1a8] sm:$0xff]
        %v298 = vld [vmem:[%s200 + $0x1b0] sm:$0xff]
        %v299 = vld [vmem:[%s200 + $0x1b8] sm:$0xff]
        %v300 = vld [vmem:[%s200 + $0x1c0] sm:$0xff]
        %v301 = vld [vmem:[%s200 + $0x1c8] sm:$0xff]
        %v302 = vld [vmem:[%s200 + $0x1d0] sm:$0xff]
        %v303 = vld [vmem:[%s200 + $0x1d8] sm:$0xff]
        %v304 = vld [vmem:[%s200 + $0x1e0] sm:$0xff]
        %v305 = vld [vmem:[%s200 + $0x1e8] sm:$0xff]
        %v306 = vld [vmem:[%s200 + $0x1f0] sm:$0xff]
        %v307 = vld [vmem:[%s200 + $0x1f8] sm:$0xff]
        %v308 = vld [vmem:[%s240] sm:$0xf]
        %v310 = vperm.slane %v308, 0
        %v311 = vperm.slane %v308, 1
        %v312 = vperm.slane %v308, 2
        %v313 = vperm.slane %v308, 3
        %318 = vmatpush.msra.mxu0 %v304
        %319 = vmatpush.msra.mxu0 %v300
        %320 = vmatpush.msra.mxu0 %v296
        %321 = vmatpush.msra.mxu0 %v292
        %322 = vmatpush.msra.mxu0 %v288
        %323 = vmatpush.msra.mxu0 %v284
        %324 = vmatpush.msra.mxu0 %v280
        %325 = vmatpush.msra.mxu0 %v276
        %326 = vmatpush.msra.mxu0 %v272
        %327 = vmatpush.msra.mxu0 %v268
        %328 = vmatpush.msra.mxu0 %v264
        %329 = vmatpush.msra.mxu0 %v260
        %330 = vmatpush.msra.mxu0 %v256
        %331 = vmatpush.msra.mxu0 %v252
        %332 = vmatpush.msra.mxu0 %v248
        %333 = vmatpush.msra.mxu0 %v244
        %334 = vmatmul.f32.gmra.mxu0 %v243
        %v335 = vpop.f32.mrf.mxu0
        %v336 = vadd.f32 %v310, %v335
        %337 = vdwg.mxu0
        %338 = vmatpush.msra.mxu0 %v305
        %339 = vmatpush.msra.mxu0 %v301
        %340 = vmatpush.msra.mxu0 %v297
        %341 = vmatpush.msra.mxu0 %v293
        %342 = vmatpush.msra.mxu0 %v289
        %343 = vmatpush.msra.mxu0 %v285
        %344 = vmatpush.msra.mxu0 %v281
        %345 = vmatpush.msra.mxu0 %v277
        %346 = vmatpush.msra.mxu0 %v273
        %347 = vmatpush.msra.mxu0 %v269
        %348 = vmatpush.msra.mxu0 %v265
        %349 = vmatpush.msra.mxu0 %v261
        %350 = vmatpush.msra.mxu0 %v257
        %351 = vmatpush.msra.mxu0 %v253
        %352 = vmatpush.msra.mxu0 %v249
        %353 = vmatpush.msra.mxu0 %v245
        %354 = vmatmul.f32.gmra.mxu0 %v243
        %v355 = vpop.f32.mrf.mxu0
        %v356 = vadd.f32 %v311, %v355
        %357 = vdwg.mxu0
        %358 = vmatpush.msra.mxu0 %v306
        %359 = vmatpush.msra.mxu0 %v302
        %360 = vmatpush.msra.mxu0 %v298
        %361 = vmatpush.msra.mxu0 %v294
        %362 = vmatpush.msra.mxu0 %v290
        %363 = vmatpush.msra.mxu0 %v286
        %364 = vmatpush.msra.mxu0 %v282
        %365 = vmatpush.msra.mxu0 %v278
        %366 = vmatpush.msra.mxu0 %v274
        %367 = vmatpush.msra.mxu0 %v270
        %368 = vmatpush.msra.mxu0 %v266
        %369 = vmatpush.msra.mxu0 %v262
        %370 = vmatpush.msra.mxu0 %v258
        %371 = vmatpush.msra.mxu0 %v254
        %372 = vmatpush.msra.mxu0 %v250
        %373 = vmatpush.msra.mxu0 %v246
        %374 = vmatmul.f32.gmra.mxu0 %v243
        %v375 = vpop.f32.mrf.mxu0
        %v376 = vadd.f32 %v312, %v375
        %377 = vdwg.mxu0
        %378 = vmatpush.msra.mxu0 %v307
        %379 = vmatpush.msra.mxu0 %v303
        %380 = vmatpush.msra.mxu0 %v299
        %381 = vmatpush.msra.mxu0 %v295
        %382 = vmatpush.msra.mxu0 %v291
        %383 = vmatpush.msra.mxu0 %v287
        %384 = vmatpush.msra.mxu0 %v283
        %385 = vmatpush.msra.mxu0 %v279
        %386 = vmatpush.msra.mxu0 %v275
        %387 = vmatpush.msra.mxu0 %v271
        %388 = vmatpush.msra.mxu0 %v267
        %389 = vmatpush.msra.mxu0 %v263
        %390 = vmatpush.msra.mxu0 %v259
        %391 = vmatpush.msra.mxu0 %v255
        %392 = vmatpush.msra.mxu0 %v251
        %393 = vmatpush.msra.mxu0 %v247
        %394 = vmatmul.f32.gmra.mxu0 %v243
        %v395 = vpop.f32.mrf.mxu0
        %v396 = vadd.f32 %v313, %v395
        %397 = vdwg.mxu0
        %398 = vst [vmem:[%s231] sm:$0xff] %v336
        %399 = vst [vmem:[%s231 + $0x8] sm:$0xff] %v356
        %400 = vst [vmem:[%s231 + $0x10] sm:$0xff] %v376
        %401 = vst [vmem:[%s231 + $0x18] sm:$0xff] %v396
        %s402 = sand.u32 %s120, 1
        %s403 = scalar_lea.sflag [#allocation4], %s402
        %s404 = sand.u32 %s120, 1
        %s405 = smul.addr %s404, 32
        %s406 = scalar_lea.vmem [#allocation5], %s405
        // Predicated region
        $region37: #{gpt_lm_head.3} parent=31 // pred_check
          %p407 = pneg %p130
        $region38: #{gpt_lm_head.3} parent=31 // pred_check_branch
          %409 = sbr.rel (%p407) target = $region40
        $region39: #{gpt_lm_head.3} parent=31 // pred_region
          %s410 = smul.u32 4, %s25
          %412 = vsyncadd %s403, 0
          %s413 = smul.addr %s24, 8
          %s414 = sadd.s32 %s410, %s413
          %s415 = smul.addr %s414, 8
          %s416 = scalar_lea.hbm %s3, %s415
          %s418 = sshll.u32 %s406, 4
          %s419 = int_to_ptr.vmem [resolvable:$true] %s418
          %s420 = sshll.u32 %s416, 4
          %s421 = int_to_ptr.hbm [resolvable:$true] %s420
          %423 = dma.vmem_to_hbm [thread:$0]  %s419, 512, %s421, %s403
        $region40: #{gpt_lm_head.3} parent=31 // pred_fallthru
          _
      $region32: #{gpt_lm_head.3} parent=5 // pred_fallthru
        _
      %p424 = scmp.le.s32.totalorder 2, %s15
      // Predicated region
      $region41: #{gpt_lm_head.3} parent=5 // pred_check
        %p425 = pneg %p424
      $region42: #{gpt_lm_head.3} parent=5 // pred_check_branch
        %427 = sbr.rel (%p425) target = $region44
      $region43: #{gpt_lm_head.3} parent=5 // pred_region
        %s428 = ssub.s32 %s15, 2
        // Predicated region
        $region45: #{gpt_lm_head.3} parent=43 // pred_check
          %p429 = pneg %p136
        $region46: #{gpt_lm_head.3} parent=43 // pred_check_branch
          %431 = sbr.rel (%p429) target = $region48
        $region47: #{gpt_lm_head.3} parent=43 // pred_region
          %s432 = sand.u32 %s121, 1
          %s433 = scalar_lea.sflag [#allocation4], %s432
          %s434 = sand.u32 %s121, 1
          %s435 = smul.addr %s434, 32
          %s436 = scalar_lea.vmem [#allocation5], %s435
          %438 = dma.done %s433, 512
        $region48: #{gpt_lm_head.3} parent=43 // pred_fallthru
          _
      $region44: #{gpt_lm_head.3} parent=5 // pred_fallthru
        _
    $region6: #{gpt_lm_head.3} parent=1 // loop_footer
      %s19 = sadd.s32 1, %s15
    $region7: #{gpt_lm_head.3} parent=1 // loop_footer_branch
      %14 = sbr.rel target = $region3
    $region8: #{gpt_lm_head.3} parent=1 // loop_exit
      _
    %439 = vsyncpa [#allocation3], 1
    %s440 = scalar_lea.sflag [#allocation3], 1
    %441 = vsyncpa %s440, 1
    %442 = vsyncpa [#allocation4], 1
    %s443 = scalar_lea.sflag [#allocation4], 1
    %444 = vsyncpa %s443, 1

// kernel: gpt_lm_head.2
$region0: #{gpt_lm_head.2}
  #allocation0 [shape = 'u32[]', space=smem, size = 0x4, offset = 0x4, fixed_abs, tag = 'smem constant byte address 0x4 - core index']
  #allocation1 [shape = 'u32[72,128]{1,0:T(1,128)}', space=vmem, size = 0x9000, scoped, tag = 'internal scratch']
  %s0 = inlined_call_operand.hbm [shape: f32[16,256], index: 0, kind: input, shape index: {}]
  %s1 = inlined_call_operand.vmem [shape: f32[1,256], index: 1, kind: input, shape index: {}]
  %s2 = inlined_call_operand.hbm [shape: f32[1,256], index: 2, kind: input, shape index: {}]
  %s3 = inlined_call_operand.hbm [shape: f32[256,128], index: 3, kind: input, shape index: {}]
  %s4 = inlined_call_operand.hbm [shape: f32[1,128], index: 4, kind: input, shape index: {}]
  %s5 = inlined_call_operand.vmem [shape: f32[1,128], index: 5, kind: input, shape index: {}]
  %s6 = inlined_call_operand.vmem [shape: f32[1,128], index: 6, kind: input, shape index: {}]
  %s7 = inlined_call_operand.vmem [shape: f32[16,128], index: 7, kind: output, shape index: {}]
  %s8 = sld [smem:[#allocation0]]
  $region77: #{gpt_lm_head.2} parent=0
    _
  %s10 = ssub.s32 1, %s8
  %s11 = scalar_select 0, %s10, %s8
  $region1: #{gpt_lm_head.2} parent=0
    #allocation2 [shape = 'u8[16384]{0}', space=vmem, size = 0x4000, scoped, tag = 'input window, operand 0']
    #allocation3 [shape = 's32[2]{0}', space=sflag, size = 0x8, scoped, tag = 'scoped memory for gpt_lm_head.2']
    #allocation4 [shape = 'u8[1024]{0}', space=vmem, size = 0x400, scoped, tag = 'input window, operand 2, single buffered']
    #allocation5 [shape = 's32[1]{0}', space=sflag, size = 0x4, scoped, tag = 'scoped memory for gpt_lm_head.2']
    #allocation6 [shape = 'u8[131072]{0}', space=vmem, size = 0x20000, scoped, tag = 'input window, operand 3, single buffered']
    #allocation7 [shape = 'u8[512]{0}', space=vmem, size = 0x400, scoped, tag = 'input window, operand 4, single buffered']
    #allocation8 [shape = 's32[1]{0}', space=sflag, size = 0x4, scoped, tag = 'scoped memory for gpt_lm_head.2']
    %12 = vsyncpa [#allocation3], 0
    %s13 = scalar_lea.sflag [#allocation3], 1
    %14 = vsyncpa %s13, 0
    %15 = vsyncpa [#allocation5], 0
    %16 = vsyncpa [#allocation8], 0
    loop: start=0, step=1, limit=4
    $region2: #{gpt_lm_head.2} parent=1 // loop_pre_header
      _
    $region3: #{gpt_lm_head.2} parent=1 // loop_header
      %s18 = sphi 0, %s22
      %p19 = scmp.ge.s32.totalorder %s18, 4
      %s28 = sphi 0, %s30
      %s31 = sphi 0, %s28
      %s32 = sphi 0, %s31
      %s48 = sphi 0, %s32
      %s52 = sphi 0, %s52
      %s54 = sphi 0, %s52
      %s55 = sphi 0, %s54
      %s69 = sphi 0, %s55
      %s73 = sphi 0, %s73
      %s75 = sphi 0, %s73
      %s76 = sphi 0, %s75
      %s90 = sphi 0, %s76
      %s94 = sphi 0, %s94
      %s96 = sphi 0, %s94
      %s97 = sphi 0, %s96
      %s111 = sphi 0, %s97
      %s115 = sphi 0, %s115
      %s117 = sphi 0, %s115
      %s118 = sphi 0, %s117
      %s132 = sphi 0, %s118
      %s136 = sphi 0, %s136
      %s138 = sphi 0, %s136
      %s139 = sphi 0, %s138
      %s153 = sphi 0, %s139
      %s157 = sphi 0, %s157
      %s159 = sphi 0, %s157
      %s160 = sphi 0, %s159
      %s174 = sphi 0, %s160
      %s180 = sphi 0, %s182
      %s183 = sphi 0, %s180
      %s184 = sphi 0, %s183
      %s200 = sphi 0, %s184
    $region4: #{gpt_lm_head.2} parent=1 // loop_header_branch
      %21 = sbr.rel (%p19) target = $region8
    $region5: #{gpt_lm_head.2} parent=1 // loop_body
      %s23 = ssub.s32 %s18, 1
      %s24 = ssub.s32 %s18, 2
      %s25 = sadd.s32 %s18, 1
      %s26 = ssub.s32 %s18, %s25
      %p27 = scmp.eq.s32.totalorder %s26, 0
      %s29 = sadd.s32 %s28, 1
      %s30 = scalar_select %p27, %s28, %s29
      %p33 = pneg %p27
      %p34 = scmp.eq.s32.totalorder %s18, 1
      %p35 = por %p33, %p34
      %p36 = scmp.ne.s32.totalorder %s28, %s31
      %p37 = scmp.eq.s32.totalorder %s18, 0
      %p38 = por %p36, %p37
      %p39 = scmp.ne.s32.totalorder %s28, %s31
      %p40 = scmp.eq.s32.totalorder %s23, 1
      %p41 = por %p39, %p40
      %p42 = scmp.ne.s32.totalorder %s31, %s32
      %p43 = scmp.eq.s32.totalorder %s23, 0
      %p44 = por %p42, %p43
      %p45 = scmp.ne.s32.totalorder %s31, %s32
      %p46 = scmp.eq.s32.totalorder %s24, 1
      %p47 = por %p45, %p46
      %p49 = scmp.ne.s32.totalorder %s32, %s48
      %p50 = scmp.eq.s32.totalorder %s24, 0
      %p51 = por %p49, %p50
      %s53 = sadd.s32 %s52, 1
      %p56 = scmp.eq.s32.totalorder %s18, 1
      %p57 = scmp.ne.s32.totalorder %s52, %s54
      %p58 = scmp.eq.s32.totalorder %s18, 0
      %p59 = por %p57, %p58
      %p60 = scmp.ne.s32.totalorder %s52, %s54
      %p61 = scmp.eq.s32.totalorder %s23, 1
      %p62 = por %p60, %p61
      %p63 = scmp.ne.s32.totalorder %s54, %s55
      %p64 = scmp.eq.s32.totalorder %s23, 0
      %p65 = por %p63, %p64
      %p66 = scmp.ne.s32.totalorder %s54, %s55
      %p67 = scmp.eq.s32.totalorder %s24, 1
      %p68 = por %p66, %p67
      %p70 = scmp.ne.s32.totalorder %s55, %s69
      %p71 = scmp.eq.s32.totalorder %s24, 0
      %p72 = por %p70, %p71
      %s74 = sadd.s32 %s73, 1
      %p77 = scmp.eq.s32.totalorder %s18, 1
      %p78 = scmp.ne.s32.totalorder %s73, %s75
      %p79 = scmp.eq.s32.totalorder %s18, 0
      %p80 = por %p78, %p79
      %p81 = scmp.ne.s32.totalorder %s73, %s75
      %p82 = scmp.eq.s32.totalorder %s23, 1
      %p83 = por %p81, %p82
      %p84 = scmp.ne.s32.totalorder %s75, %s76
      %p85 = scmp.eq.s32.totalorder %s23, 0
      %p86 = por %p84, %p85
      %p87 = scmp.ne.s32.totalorder %s75, %s76
      %p88 = scmp.eq.s32.totalorder %s24, 1
      %p89 = por %p87, %p88
      %p91 = scmp.ne.s32.totalorder %s76, %s90
      %p92 = scmp.eq.s32.totalorder %s24, 0
      %p93 = por %p91, %p92
      %s95 = sadd.s32 %s94, 1
      %p98 = scmp.eq.s32.totalorder %s18, 1
      %p99 = scmp.ne.s32.totalorder %s94, %s96
      %p100 = scmp.eq.s32.totalorder %s18, 0
      %p101 = por %p99, %p100
      %p102 = scmp.ne.s32.totalorder %s94, %s96
      %p103 = scmp.eq.s32.totalorder %s23, 1
      %p104 = por %p102, %p103
      %p105 = scmp.ne.s32.totalorder %s96, %s97
      %p106 = scmp.eq.s32.totalorder %s23, 0
      %p107 = por %p105, %p106
      %p108 = scmp.ne.s32.totalorder %s96, %s97
      %p109 = scmp.eq.s32.totalorder %s24, 1
      %p110 = por %p108, %p109
      %p112 = scmp.ne.s32.totalorder %s97, %s111
      %p113 = scmp.eq.s32.totalorder %s24, 0
      %p114 = por %p112, %p113
      %s116 = sadd.s32 %s115, 1
      %p119 = scmp.eq.s32.totalorder %s18, 1
      %p120 = scmp.ne.s32.totalorder %s115, %s117
      %p121 = scmp.eq.s32.totalorder %s18, 0
      %p122 = por %p120, %p121
      %p123 = scmp.ne.s32.totalorder %s115, %s117
      %p124 = scmp.eq.s32.totalorder %s23, 1
      %p125 = por %p123, %p124
      %p126 = scmp.ne.s32.totalorder %s117, %s118
      %p127 = scmp.eq.s32.totalorder %s23, 0
      %p128 = por %p126, %p127
      %p129 = scmp.ne.s32.totalorder %s117, %s118
      %p130 = scmp.eq.s32.totalorder %s24, 1
      %p131 = por %p129, %p130
      %p133 = scmp.ne.s32.totalorder %s118, %s132
      %p134 = scmp.eq.s32.totalorder %s24, 0
      %p135 = por %p133, %p134
      %s137 = sadd.s32 %s136, 1
      %p140 = scmp.eq.s32.totalorder %s18, 1
      %p141 = scmp.ne.s32.totalorder %s136, %s138
      %p142 = scmp.eq.s32.totalorder %s18, 0
      %p143 = por %p141, %p142
      %p144 = scmp.ne.s32.totalorder %s136, %s138
      %p145 = scmp.eq.s32.totalorder %s23, 1
      %p146 = por %p144, %p145
      %p147 = scmp.ne.s32.totalorder %s138, %s139
      %p148 = scmp.eq.s32.totalorder %s23, 0
      %p149 = por %p147, %p148
      %p150 = scmp.ne.s32.totalorder %s138, %s139
      %p151 = scmp.eq.s32.totalorder %s24, 1
      %p152 = por %p150, %p151
      %p154 = scmp.ne.s32.totalorder %s139, %s153
      %p155 = scmp.eq.s32.totalorder %s24, 0
      %p156 = por %p154, %p155
      %s158 = sadd.s32 %s157, 1
      %p161 = scmp.eq.s32.totalorder %s18, 1
      %p162 = scmp.ne.s32.totalorder %s157, %s159
      %p163 = scmp.eq.s32.totalorder %s18, 0
      %p164 = por %p162, %p163
      %p165 = scmp.ne.s32.totalorder %s157, %s159
      %p166 = scmp.eq.s32.totalorder %s23, 1
      %p167 = por %p165, %p166
      %p168 = scmp.ne.s32.totalorder %s159, %s160
      %p169 = scmp.eq.s32.totalorder %s23, 0
      %p170 = por %p168, %p169
      %p171 = scmp.ne.s32.totalorder %s159, %s160
      %p172 = scmp.eq.s32.totalorder %s24, 1
      %p173 = por %p171, %p172
      %p175 = scmp.ne.s32.totalorder %s160, %s174
      %p176 = scmp.eq.s32.totalorder %s24, 0
      %p177 = por %p175, %p176
      %s178 = ssub.s32 %s18, %s25
      %p179 = scmp.eq.s32.totalorder %s178, 0
      %s181 = sadd.s32 %s180, 1
      %s182 = scalar_select %p179, %s180, %s181
      %p185 = pneg %p179
      %p186 = scmp.eq.s32.totalorder %s18, 1
      %p187 = por %p185, %p186
      %p188 = scmp.ne.s32.totalorder %s180, %s183
      %p189 = scmp.eq.s32.totalorder %s18, 0
      %p190 = por %p188, %p189
      %p191 = scmp.ne.s32.totalorder %s180, %s183
      %p192 = scmp.eq.s32.totalorder %s23, 1
      %p193 = por %p191, %p192
      %p194 = scmp.ne.s32.totalorder %s183, %s184
      %p195 = scmp.eq.s32.totalorder %s23, 0
      %p196 = por %p194, %p195
      %p197 = scmp.ne.s32.totalorder %s183, %s184
      %p198 = scmp.eq.s32.totalorder %s24, 1
      %p199 = por %p197, %p198
      %p201 = scmp.ne.s32.totalorder %s184, %s200
      %p202 = scmp.eq.s32.totalorder %s24, 0
      %p203 = por %p201, %p202
      %p204 = scmp.le.s32.totalorder 1, %s18
      %p205 = scmp.lt.s32.totalorder %s18, 3
      %p206 = pnand %p204, %p205
      %p207 = pneg %p206
      // Predicated region
      $region9: #{gpt_lm_head.2} parent=5 // pred_check
        _
      $region10: #{gpt_lm_head.2} parent=5 // pred_check_branch
        %209 = sbr.rel (%p206) target = $region12
      $region11: #{gpt_lm_head.2} parent=5 // pred_region
        %s210 = ssub.s32 %s18, 1
        // Predicated region
        $region13: #{gpt_lm_head.2} parent=11 // pred_check
          %p211 = pneg %p65
        $region14: #{gpt_lm_head.2} parent=11 // pred_check_branch
          %213 = sbr.rel (%p211) target = $region16
        $region15: #{gpt_lm_head.2} parent=11 // pred_region
          _
        $region16: #{gpt_lm_head.2} parent=11 // pred_fallthru
          _
        // Predicated region
        $region17: #{gpt_lm_head.2} parent=11 // pred_check
          %p214 = pneg %p86
        $region18: #{gpt_lm_head.2} parent=11 // pred_check_branch
          %216 = sbr.rel (%p214) target = $region20
        $region19: #{gpt_lm_head.2} parent=11 // pred_region
          %218 = vsyncadd [#allocation5], 0
          %s220 = sshll.u32 %s2, 4
          %s221 = int_to_ptr.hbm [resolvable:$true] %s220
          %s222 = sshll.u32 [#allocation4], 4
          %s223 = int_to_ptr.vmem [resolvable:$true] %s222
          %225 = dma.hbm_to_vmem [thread:$0]  %s221, 32, %s223, [#allocation5]
        $region20: #{gpt_lm_head.2} parent=11 // pred_fallthru
          _
        // Predicated region
        $region21: #{gpt_lm_head.2} parent=11 // pred_check
          %p226 = pneg %p107
        $region22: #{gpt_lm_head.2} parent=11 // pred_check_branch
          %228 = sbr.rel (%p226) target = $region24
        $region23: #{gpt_lm_head.2} parent=11 // pred_region
          %230 = vsyncadd [#allocation5], 0
          %s231 = sshll.u32 %s3, 4
          %s232 = int_to_ptr.hbm [resolvable:$true] %s231
          %s233 = sshll.u32 [#allocation6], 4
          %s234 = int_to_ptr.vmem [resolvable:$true] %s233
          %239 = dma.hbm_to_vmem [thread:$0]  %s232, 4096, %s234, [#allocation5], 128, 128, 8
        $region24: #{gpt_lm_head.2} parent=11 // pred_fallthru
          _
        // Predicated region
        $region25: #{gpt_lm_head.2} parent=11 // pred_check
          %p240 = pneg %p128
        $region26: #{gpt_lm_head.2} parent=11 // pred_check_branch
          %242 = sbr.rel (%p240) target = $region28
        $region27: #{gpt_lm_head.2} parent=11 // pred_region
          %244 = vsyncadd [#allocation8], 0
          %s246 = sshll.u32 %s4, 4
          %s247 = int_to_ptr.hbm [resolvable:$true] %s246
          %s248 = sshll.u32 [#allocation7], 4
          %s249 = int_to_ptr.vmem [resolvable:$true] %s248
          %251 = dma.hbm_to_vmem [thread:$0]  %s247, 16, %s249, [#allocation8]
        $region28: #{gpt_lm_head.2} parent=11 // pred_fallthru
          _
        // Predicated region
        $region29: #{gpt_lm_head.2} parent=11 // pred_check
          %p252 = pneg %p149
        $region30: #{gpt_lm_head.2} parent=11 // pred_check_branch
          %254 = sbr.rel (%p252) target = $region32
        $region31: #{gpt_lm_head.2} parent=11 // pred_region
          _
        $region32: #{gpt_lm_head.2} parent=11 // pred_fallthru
          _
        // Predicated region
        $region33: #{gpt_lm_head.2} parent=11 // pred_check
          %p255 = pneg %p170
        $region34: #{gpt_lm_head.2} parent=11 // pred_check_branch
          %257 = sbr.rel (%p255) target = $region36
        $region35: #{gpt_lm_head.2} parent=11 // pred_region
          _
        $region36: #{gpt_lm_head.2} parent=11 // pred_fallthru
          _
      $region12: #{gpt_lm_head.2} parent=5 // pred_fallthru
        _
      %p258 = scmp.lt.s32.totalorder %s18, 2
      // Predicated region
      $region37: #{gpt_lm_head.2} parent=5 // pred_check
        %p259 = pneg %p258
      $region38: #{gpt_lm_head.2} parent=5 // pred_check_branch
        %261 = sbr.rel (%p259) target = $region40
      $region39: #{gpt_lm_head.2} parent=5 // pred_region
        // Predicated region
        $region41: #{gpt_lm_head.2} parent=39 // pred_check
          %p262 = pneg %p38
        $region42: #{gpt_lm_head.2} parent=39 // pred_check_branch
          %264 = sbr.rel (%p262) target = $region44
        $region43: #{gpt_lm_head.2} parent=39 // pred_region
          %s265 = sand.u32 %s28, 1
          %s266 = scalar_lea.sflag [#allocation3], %s265
          %s267 = sand.u32 %s28, 1
          %s268 = smul.addr %s267, 16
          %s269 = scalar_lea.vmem [#allocation2], %s268
          %271 = vsyncadd %s266, 0
          %s272 = smul.addr %s18, 2
          %s273 = smul.addr %s272, 8
          %s274 = scalar_lea.hbm %s0, %s273
          %s276 = sshll.u32 %s274, 4
          %s277 = int_to_ptr.hbm [resolvable:$true] %s276
          %s278 = sshll.u32 %s269, 4
          %s279 = int_to_ptr.vmem [resolvable:$true] %s278
          %281 = dma.hbm_to_vmem [thread:$0]  %s277, 256, %s279, %s266
        $region44: #{gpt_lm_head.2} parent=39 // pred_fallthru
          _
      $region40: #{gpt_lm_head.2} parent=5 // pred_fallthru
        _
      %p282 = scmp.le.s32.totalorder 1, %s18
      %p283 = scmp.lt.s32.totalorder %s18, 3
      %p284 = pnand %p282, %p283
      %p285 = pneg %p284
      // Predicated region
      $region45: #{gpt_lm_head.2} parent=5 // pred_check
        _
      $region46: #{gpt_lm_head.2} parent=5 // pred_check_branch
        %287 = sbr.rel (%p284) target = $region48
      $region47: #{gpt_lm_head.2} parent=5 // pred_region
        %s288 = ssub.s32 %s18, 1
        %s289 = sand.u32 %s31, 1
        %s290 = scalar_lea.sflag [#allocation3], %s289
        %s291 = sand.u32 %s31, 1
        %s292 = smul.addr %s291, 16
        %s293 = scalar_lea.vmem [#allocation2], %s292
        // Predicated region
        $region49: #{gpt_lm_head.2} parent=47 // pred_check
          %p294 = pneg %p44
        $region50: #{gpt_lm_head.2} parent=47 // pred_check_branch
          %296 = sbr.rel (%p294) target = $region52
        $region51: #{gpt_lm_head.2} parent=47 // pred_region
          %298 = dma.done %s290, 256
        $region52: #{gpt_lm_head.2} parent=47 // pred_fallthru
          _
        // Predicated region
        $region53: #{gpt_lm_head.2} parent=47 // pred_check
          %p299 = pneg %p86
        $region54: #{gpt_lm_head.2} parent=47 // pred_check_branch
          %301 = sbr.rel (%p299) target = $region56
        $region55: #{gpt_lm_head.2} parent=47 // pred_region
          %303 = dma.done [#allocation5], 32
        $region56: #{gpt_lm_head.2} parent=47 // pred_fallthru
          _
        // Predicated region
        $region57: #{gpt_lm_head.2} parent=47 // pred_check
          %p304 = pneg %p107
        $region58: #{gpt_lm_head.2} parent=47 // pred_check_branch
          %306 = sbr.rel (%p304) target = $region60
        $region59: #{gpt_lm_head.2} parent=47 // pred_region
          %308 = dma.done [#allocation5], 4096
        $region60: #{gpt_lm_head.2} parent=47 // pred_fallthru
          _
        // Predicated region
        $region61: #{gpt_lm_head.2} parent=47 // pred_check
          %p309 = pneg %p128
        $region62: #{gpt_lm_head.2} parent=47 // pred_check_branch
          %311 = sbr.rel (%p309) target = $region64
        $region63: #{gpt_lm_head.2} parent=47 // pred_region
          %313 = dma.done [#allocation8], 16
        $region64: #{gpt_lm_head.2} parent=47 // pred_fallthru
          _
        %s314 = sand.u32 %s31, 1
        %s315 = scalar_lea.sflag [#allocation3], %s314
        %s316 = sand.u32 %s31, 1
        %s317 = smul.addr %s316, 16
        %s318 = scalar_lea.vmem [#allocation2], %s317
        %p319 = pneg %p44
        %p320 = pneg %p41
        %p321 = pneg %p65
        %p322 = pneg %p62
        %p323 = pneg %p86
        %p324 = pneg %p83
        %p325 = pneg %p107
        %p326 = pneg %p104
        %p327 = pneg %p128
        %p328 = pneg %p125
        %p329 = pneg %p149
        %p330 = pneg %p146
        %p331 = pneg %p170
        %p332 = pneg %p167
        %p333 = pneg %p196
        %p334 = pneg %p193
        %p335 = scmp.lt.s32.totalorder %s23, 1
        %s336 = scalar_select %p335, %s23, 1
        %s337 = smul.addr %s336, 8
        %s338 = scalar_lea.vmem %s7, %s337
        %p339 = scmp.lt.s32.totalorder %s23, 1
        %s340 = scalar_select %p339, %s23, 1
        %s341 = smul.addr %s340, 8
        %s342 = scalar_lea.vmem %s7, %s341
        %v343 = vld [vmem:[%s293] sm:$0xff]
        %v344 = vld [vmem:[%s293 + $0x8] sm:$0xff]
        %v345 = vld [vmem:[%s1] sm:$0x3]
        %v346 = vld [vmem:[#allocation4] sm:$0x3]
        %v347 = vadd.f32 %v343, %v344
        %348 = vadd.xlane.f32.xlu0 %v347
        %v349 = vpop.xlane.xlu0 %348
        %v350 = vrcp.pop 256.0
        %v351 = vmul.f32 256.0, %v350
        %v352 = vsub.f32 1.0, %v351
        %v353 = vmul.f32 %v350, %v352
        %v354 = vadd.f32 %v350, %v353
        %vm355 = vweird.f32 %v350
        %v356 = vsel %vm355, %v350, %v354
        %v357 = vmul.f32 %v349, %v356
        %v358 = vsub.f32 %v343, %v357
        %v359 = vsub.f32 %v344, %v357
        %v360 = vmul.f32 %v358, %v358
        %v361 = vmul.f32 %v359, %v359
        %v362 = vadd.f32 %v360, %v361
        %363 = vadd.xlane.f32.xlu0 %v362
        %v364 = vpop.xlane.xlu0 %363
        %v365 = vmul.f32 %v364, %v356
        %v366 = vadd.f32 %v365, 1e-05
        %v367 = vrsqrt.pop %v366
        %v368 = vmul.f32 %v367, %v366
        %v369 = vmul.f32 %v368, %v367
        %v370 = vmul.f32 0.5, %v369
        %v371 = vsub.f32 1.5, %v370
        %v372 = vmul.f32 %v367, %v371
        %vm373 = vweird.f32 %v366
        %vm374 = vweird.f32 %v367
        %vm375 = vmor %vm373, %vm374
        %v376 = vsel %vm375, %v367, %v372
        %v377 = vmul.f32 %v358, %v376
        %v378 = vmul.f32 %v359, %v376
        %v380 = vperm.slane %v345, 0
        %v381 = vperm.slane %v345, 1
        %v384 = vmul.f32 %v377, %v380
        %v385 = vmul.f32 %v378, %v381
        %v387 = vperm.slane %v346, 0
        %v388 = vperm.slane %v346, 1
        %v391 = vadd.f32 %v384, %v387
        %v392 = vadd.f32 %v385, %v388
        %v393 = vld [vmem:[#allocation6] sm:$0xff]
        %v394 = vld [vmem:[#allocation6 + $0x8] sm:$0xff]
        %v395 = vld [vmem:[#allocation6 + $0x10] sm:$0xff]
        %v396 = vld [vmem:[#allocation6 + $0x18] sm:$0xff]
        %v397 = vld [vmem:[#allocation6 + $0x20] sm:$0xff]
        %v398 = vld [vmem:[#allocation6 + $0x28] sm:$0xff]
        %v399 = vld [vmem:[#allocation6 + $0x30] sm:$0xff]
        %v400 = vld [vmem:[#allocation6 + $0x38] sm:$0xff]
        %v401 = vld [vmem:[#allocation6 + $0x40] sm:$0xff]
        %v402 = vld [vmem:[#allocation6 + $0x48] sm:$0xff]
        %v403 = vld [vmem:[#allocation6 + $0x50] sm:$0xff]
        %v404 = vld [vmem:[#allocation6 + $0x58] sm:$0xff]
        %v405 = vld [vmem:[#allocation6 + $0x60] sm:$0xff]
        %v406 = vld [vmem:[#allocation6 + $0x68] sm:$0xff]
        %v407 = vld [vmem:[#allocation6 + $0x70] sm:$0xff]
        %v408 = vld [vmem:[#allocation6 + $0x78] sm:$0xff]
        %v409 = vld [vmem:[#allocation6 + $0x80] sm:$0xff]
        %v410 = vld [vmem:[#allocation6 + $0x88] sm:$0xff]
        %v411 = vld [vmem:[#allocation6 + $0x90] sm:$0xff]
        %v412 = vld [vmem:[#allocation6 + $0x98] sm:$0xff]
        %v413 = vld [vmem:[#allocation6 + $0xa0] sm:$0xff]
        %v414 = vld [vmem:[#allocation6 + $0xa8] sm:$0xff]
        %v415 = vld [vmem:[#allocation6 + $0xb0] sm:$0xff]
        %v416 = vld [vmem:[#allocation6 + $0xb8] sm:$0xff]
        %v417 = vld [vmem:[#allocation6 + $0xc0] sm:$0xff]
        %v418 = vld [vmem:[#allocation6 + $0xc8] sm:$0xff]
        %v419 = vld [vmem:[#allocation6 + $0xd0] sm:$0xff]
        %v420 = vld [vmem:[#allocation6 + $0xd8] sm:$0xff]
        %v421 = vld [vmem:[#allocation6 + $0xe0] sm:$0xff]
        %v422 = vld [vmem:[#allocation6 + $0xe8] sm:$0xff]
        %v423 = vld [vmem:[#allocation6 + $0xf0] sm:$0xff]
        %v424 = vld [vmem:[#allocation6 + $0xf8] sm:$0xff]
        %v425 = vld [vmem:[#allocation7] sm:$0x1]
        %v427 = vperm.slane %v425, 0
        %429 = vmatpush.msra.mxu0 %v408
        %430 = vmatpush.msra.mxu0 %v407
        %431 = vmatpush.msra.mxu0 %v406
        %432 = vmatpush.msra.mxu0 %v405
        %433 = vmatpush.msra.mxu0 %v404
        %434 = vmatpush.msra.mxu0 %v403
        %435 = vmatpush.msra.mxu0 %v402
        %436 = vmatpush.msra.mxu0 %v401
        %437 = vmatpush.msra.mxu0 %v400
        %438 = vmatpush.msra.mxu0 %v399
        %439 = vmatpush.msra.mxu0 %v398
        %440 = vmatpush.msra.mxu0 %v397
        %441 = vmatpush.msra.mxu0 %v396
        %442 = vmatpush.msra.mxu0 %v395
        %443 = vmatpush.msra.mxu0 %v394
        %444 = vmatpush.msra.mxu0 %v393
        %445 = vmatmul.f32.gmra.mxu0 %v391
        %v446 = vpop.f32.mrf.mxu0
        %v447 = vadd.f32 %v427, %v446
        %448 = vdwg.mxu0
        %449 = vmatpush.msra.mxu0 %v424
        %450 = vmatpush.msra.mxu0 %v423
        %451 = vmatpush.msra.mxu0 %v422
        %452 = vmatpush.msra.mxu0 %v421
        %453 = vmatpush.msra.mxu0 %v420
        %454 = vmatpush.msra.mxu0 %v419
        %455 = vmatpush.msra.mxu0 %v418
        %456 = vmatpush.msra.mxu0 %v417
        %457 = vmatpush.msra.mxu0 %v416
        %458 = vmatpush.msra.mxu0 %v415
        %459 = vmatpush.msra.mxu0 %v414
        %460 = vmatpush.msra.mxu0 %v413
        %461 = vmatpush.msra.mxu0 %v412
        %462 = vmatpush.msra.mxu0 %v411
        %463 = vmatpush.msra.mxu0 %v410
        %464 = vmatpush.msra.mxu0 %v409
        %465 = vmatmul.f32.gmra.mxu0 %v392
        %v466 = vpop.f32.mrf.mxu0
        %v467 = vadd.f32 %v447, %v466
        %468 = vdwg.mxu0
        %v469 = vmul.f32 %v467, 0.5
        %v470 = vrcp.pop 1.4142135
        %v471 = vmul.f32 1.4142135, %v470
        %v472 = vsub.f32 1.0, %v471
        %v473 = vmul.f32 %v470, %v472
        %v474 = vadd.f32 %v470, %v473
        %vm475 = vweird.f32 %v470
        %v476 = vsel %vm475, %v470, %v474
        %v477 = vmul.f32 %v467, %v476
        %v478 = vmul.f32 %v477, %v477
        %v479 = vmin.f32 16.0, %v478
        %v480 = vmul.f32 %v479, 2.1237322e-06
        %v481 = vadd.f32 %v480, 0.00028619796
        %v482 = vmul.f32 %v479, %v481
        %v483 = vadd.f32 %v482, 0.0036580483
        %v484 = vmul.f32 %v479, %v483
        %v485 = vadd.f32 %v484, 0.05243302
        %v486 = vmul.f32 %v479, %v485
        %v487 = vadd.f32 %v486, 0.18741608
        %v488 = vmul.f32 %v479, %v487
        %v489 = vadd.f32 %v488, 1.1283791
        %v490 = vmul.f32 %v477, %v489
        %v491 = vmul.f32 %v479, 3.8918573e-05
        %v492 = vadd.f32 %v491, 0.001143296
        %v493 = vmul.f32 %v479, %v492
        %v494 = vadd.f32 %v493, 0.014752088
        %v495 = vmul.f32 %v479, %v494
        %v496 = vadd.f32 %v495, 0.112945676
        %v497 = vmul.f32 %v479, %v496
        %v498 = vadd.f32 %v497, 0.4994258
        %v499 = vmul.f32 %v479, %v498
        %v500 = vadd.f32 %v499, 1.0
        %v501 = vrcp.pop %v500
        %v502 = vmul.f32 %v500, %v501
        %v503 = vsub.f32 1.0, %v502
        %v504 = vmul.f32 %v501, %v503
        %v505 = vadd.f32 %v501, %v504
        %vm506 = vweird.f32 %v500
        %vm507 = vweird.f32 %v501
        %vm508 = vmor %vm506, %vm507
        %v509 = vsel %vm508, %v501, %v505
        %v510 = vand.u32 2147483647, %v500
        %vm511 = vcmp.eq.f32.partialorder %v510, 8.507059e+37
        %v512 = vand.u32 %v500, 2147483648
        %v513 = vor.u32 1.1754944e-38, %v512
        %v514 = vsel %vm511, %v513, %v509
        %v515 = vmul.f32 %v490, %v514
        %v516 = vmin.f32 %v515, 1.0
        %v517 = vmax.f32 %v516, -1.0
        %v518 = vadd.f32 %v517, 1.0
        %v519 = vmul.f32 %v469, %v518
        %v520 = vld [vmem:[%s5] sm:$0x1]
        %v521 = vld [vmem:[%s6] sm:$0x1]
        %522 = vadd.xlane.f32.xlu0 %v519
        %v523 = vpop.xlane.xlu0 %522
        %v524 = vrcp.pop 128.0
        %v525 = vmul.f32 128.0, %v524
        %v526 = vsub.f32 1.0, %v525
        %v527 = vmul.f32 %v524, %v526
        %v528 = vadd.f32 %v524, %v527
        %vm529 = vweird.f32 %v524
        %v530 = vsel %vm529, %v524, %v528
        %v531 = vmul.f32 %v523, %v530
        %v532 = vsub.f32 %v519, %v531
        %v533 = vmul.f32 %v532, %v532
        %534 = vadd.xlane.f32.xlu0 %v533
        %v535 = vpop.xlane.xlu0 %534
        %v536 = vmul.f32 %v535, %v530
        %v537 = vadd.f32 %v536, 1e-05
        %v538 = vrsqrt.pop %v537
        %v539 = vmul.f32 %v538, %v537
        %v540 = vmul.f32 %v539, %v538
        %v541 = vmul.f32 0.5, %v540
        %v542 = vsub.f32 1.5, %v541
        %v543 = vmul.f32 %v538, %v542
        %vm544 = vweird.f32 %v537
        %vm545 = vweird.f32 %v538
        %vm546 = vmor %vm544, %vm545
        %v547 = vsel %vm546, %v538, %v543
        %v548 = vmul.f32 %v532, %v547
        %v550 = vperm.slane %v520, 0
        %v552 = vmul.f32 %v548, %v550
        %v554 = vperm.slane %v521, 0
        %v556 = vadd.f32 %v552, %v554
        %557 = vst [vmem:[%s342] sm:$0xff] %v556
        %p558 = scmp.lt.s32.totalorder %s23, 1
        %s559 = scalar_select %p558, %s23, 1
        %s560 = smul.addr %s559, 8
        %s561 = scalar_lea.vmem %s7, %s560
        // Predicated region
        $region65: #{gpt_lm_head.2} parent=47 // pred_check
          %p562 = pneg %p193
        $region66: #{gpt_lm_head.2} parent=47 // pred_check_branch
          %564 = sbr.rel (%p562) target = $region68
        $region67: #{gpt_lm_head.2} parent=47 // pred_region
          _
        $region68: #{gpt_lm_head.2} parent=47 // pred_fallthru
          _
      $region48: #{gpt_lm_head.2} parent=5 // pred_fallthru
        _
      %p565 = scmp.le.s32.totalorder 2, %s18
      // Predicated region
      $region69: #{gpt_lm_head.2} parent=5 // pred_check
        %p566 = pneg %p565
      $region70: #{gpt_lm_head.2} parent=5 // pred_check_branch
        %568 = sbr.rel (%p566) target = $region72
      $region71: #{gpt_lm_head.2} parent=5 // pred_region
        %s569 = ssub.s32 %s18, 2
        // Predicated region
        $region73: #{gpt_lm_head.2} parent=71 // pred_check
          %p570 = pneg %p199
        $region74: #{gpt_lm_head.2} parent=71 // pred_check_branch
          %572 = sbr.rel (%p570) target = $region76
        $region75: #{gpt_lm_head.2} parent=71 // pred_region
          %p573 = scmp.lt.s32.totalorder %s24, 1
          %s574 = scalar_select %p573, %s24, 1
          %s575 = smul.addr %s574, 8
          %s576 = scalar_lea.vmem %s7, %s575
        $region76: #{gpt_lm_head.2} parent=71 // pred_fallthru
          _
      $region72: #{gpt_lm_head.2} parent=5 // pred_fallthru
        _
    $region6: #{gpt_lm_head.2} parent=1 // loop_footer
      %s22 = sadd.s32 1, %s18
    $region7: #{gpt_lm_head.2} parent=1 // loop_footer_branch
      %17 = sbr.rel target = $region3
    $region8: #{gpt_lm_head.2} parent=1 // loop_exit
      _
    %577 = vsyncpa [#allocation3], 1
    %s578 = scalar_lea.sflag [#allocation3], 1
    %579 = vsyncpa %s578, 1
    %580 = vsyncpa [#allocation5], 1
    %581 = vsyncpa [#allocation8], 1

</llo_original>
